<compile_context>
chip_gen: v5e
topology: v5e:2x2
jax: 0.10.0
libtpu: 0.0.40
codegen_flags: <defaults>
</compile_context>

<pallas_src>
import math

import jax
import jax.numpy as jnp
from jax.experimental import pallas as pl
from jax.experimental.pallas import tpu as pltpu


def _round_up(x, m):
    return ((x + m - 1) // m) * m


# ----------------------------------------------------------------------------
# Kernel 1: per-pixel softmax cross-entropy loss.
#   score block : (C, TP)   pulled straight out of NCHW HBM (no transpose, no pad)
#   target block: (1, TP)   int32
#   loss block  : (1, TP)   f32 ; lanes past the real pixel count get loss = -1.0
# The last tile may extend past H*W; those lanes read unspecified (clipped-DMA)
# values and are masked by the global pixel-index check below.
# ----------------------------------------------------------------------------
def _make_ce_loss_kernel(tile_p, hw):
    def kernel(score_ref, tgt_ref, loss_ref):
        i = pl.program_id(1)
        s = score_ref[...].astype(jnp.float32)                    # (C, TP)
        t = tgt_ref[...]                                          # (1, TP)

        m = jnp.max(s, axis=0, keepdims=True)                     # (1, TP)
        z = s - m
        lse = jnp.log(jnp.sum(jnp.exp(z), axis=0, keepdims=True))  # (1, TP)

        cls_ids = jax.lax.broadcasted_iota(jnp.int32, s.shape, 0)  # (C, TP)
        z_t = jnp.sum(jnp.where(cls_ids == t, z, 0.0), axis=0, keepdims=True)
        loss = lse - z_t                                           # -log softmax[target]

        lane = jax.lax.broadcasted_iota(jnp.int32, loss.shape, 1)  # (1, TP)
        pix = i * tile_p + lane
        loss_ref[...] = jnp.where(pix < hw, loss, -1.0)
    return kernel


# ----------------------------------------------------------------------------
# Kernel 2: OHEM masked partial sums over dense (TR, 1024) loss tiles.
#   thr  : (1,)       f32 in SMEM — threshold in *loss space*
#   loss : (TR, 1024) f32 VMEM tile (view of the contiguous per-pixel loss)
#   out  : (1, 2)     f32 in SMEM — [kept-loss sum, kept count] for this tile
# Rows past the real row count (ragged last tile) are masked by row index.
# ----------------------------------------------------------------------------
def _make_ohem_partial_kernel(tile_r, rows_total):
    def kernel(thr_ref, loss_ref, out_ref):
        thr = thr_ref[0]
        loss = loss_ref[...]                                       # (TR, 1024)
        row = (jax.lax.broadcasted_iota(jnp.int32, loss.shape, 0)
               + pl.program_id(1) * tile_r)
        keep = (loss > thr) & (loss >= 0.0) & (row < rows_total)
        out_ref[0, 0] = jnp.sum(jnp.where(keep, loss, 0.0))
        out_ref[0, 1] = jnp.sum(keep.astype(jnp.float32))
    return kernel


class OhemCrossEntropyPallas:
    def __init__(self, thres=0.7, min_kept=0.7, weight=None, label_smoothing=None):
        # TODO(synk): `weight` and `label_smoothing` of nn.CrossEntropyLoss are not
        # implemented (treated as weight=None, label_smoothing=0.0, the defaults).
        self.thresh = float(thres)
        self.min_kept = max(0.1, min_kept)

    def __call__(self, score, target):
        N, C, H, W = score.shape
        HW = H * W
        P = N * HW

        # --- pixel tile: VMEM-budgeted first, then pad/mask to a multiple of it ---
        itemsize = jnp.dtype(score.dtype).itemsize
        tp_budget = (4 * 1024 * 1024) // max(1, C * itemsize)     # ~4 MiB score block
        TP = max(1024, min(32768, (tp_budget // 1024) * 1024))
        TP = min(TP, _round_up(HW, 1024))
        HW_pad = _round_up(HW, TP)

        # Free reshapes of contiguous NCHW / NHW data; score is NOT padded or copied.
        score3d = score.reshape(N, C, HW)
        tgt3d = target.astype(jnp.int32).reshape(N, 1, HW)

        # --- kernel 1: per-pixel CE loss -----------------------------------------
        loss3d = pl.pallas_call(
            _make_ce_loss_kernel(TP, HW),
            out_shape=jax.ShapeDtypeStruct((N, 1, HW_pad), jnp.float32),
            grid=(N, HW_pad // TP),
            in_specs=[
                pl.BlockSpec((None, C, TP), lambda n, i: (n, 0, i)),
                pl.BlockSpec((None, 1, TP), lambda n, i: (n, 0, i)),
            ],
            out_specs=pl.BlockSpec((None, 1, TP), lambda n, i: (n, 0, i)),
            compiler_params=pltpu.CompilerParams(
                dimension_semantics=("parallel", "parallel"),
                vmem_limit_bytes=48 * 1024 * 1024),
        )(score3d, tgt3d)

        # --- threshold selection (loss space, exact two-level top-k) --------------
        # p = exp(-loss) is strictly decreasing in loss, so the (k+1)-th smallest
        # target probability corresponds to the (k+1)-th largest loss, and
        #   keep  <=>  p < max(exp(-kth_loss), thresh)
        #         <=>  loss > min(kth_loss, -log(thresh))
        # TODO(synk): top-k / sort has no clean Pallas TPU primitive; done with
        # hierarchical jax.lax.top_k in the glue.
        min_kept_value = int(self.min_kept * N)        # matches the torch module
        k = min(min_kept_value, P - 1)
        kk = k + 1
        flat = loss3d.reshape(-1)                      # padded entries are -1 (never top-k)
        total = flat.shape[0]                          # multiple of 1024
        if total >= (1 << 17) and kk <= 1024:
            lrow = 1024
            for cand_l in (8192, 4096, 2048):
                if total % cand_l == 0 and kk <= cand_l:
                    lrow = cand_l
                    break
            cand = jax.lax.top_k(flat.reshape(total // lrow, lrow), kk)[0].reshape(-1)
            kth_loss = jax.lax.top_k(cand, kk)[0][k]
        else:
            kth_loss = jax.lax.top_k(flat, kk)[0][k]
        neg_log_thresh = -math.log(self.thresh) if self.thresh > 0.0 else float("inf")
        thr_loss = jnp.minimum(kth_loss, jnp.float32(neg_log_thresh)).reshape(1)

        # --- kernel 2: tiled OHEM masked partial sums ------------------------------
        R = HW_pad // 1024                              # rows of the dense loss view
        TR = R if R <= 256 else 256                     # up to 1 MiB per block
        NPT = -(-R // TR)
        lossv = loss3d.reshape(N, R, 1024)              # free view of contiguous loss

        partials = pl.pallas_call(
            _make_ohem_partial_kernel(TR, R),
            out_shape=jax.ShapeDtypeStruct((N * NPT, 2), jnp.float32),
            grid=(N, NPT),
            in_specs=[
                pl.BlockSpec(memory_space=pltpu.MemorySpace.SMEM),        # threshold
                pl.BlockSpec((None, TR, 1024), lambda n, i: (n, i, 0)),   # loss tiles
            ],
            out_specs=pl.BlockSpec((1, 2), lambda n, i: (n * NPT + i, 0),
                                   memory_space=pltpu.MemorySpace.SMEM),
            compiler_params=pltpu.CompilerParams(
                dimension_semantics=("parallel", "parallel"),
                vmem_limit_bytes=48 * 1024 * 1024),
        )(thr_loss, lossv)

        totals = jnp.sum(partials, axis=0)
        # Empty selection -> 0/0 = NaN, matching torch's .mean() of an empty tensor.
        return totals[0] / totals[1]


# ----------------------------------------------------------------------------
# Pure-JAX reference (mirrors the PyTorch forward semantics) for verification.
# ----------------------------------------------------------------------------
def ohem_reference(score, target, thresh=0.7, min_kept=0.7):
    N, C, H, W = score.shape
    logp = jax.nn.log_softmax(score.astype(jnp.float32), axis=1)
    onehot = jax.nn.one_hot(target.astype(jnp.int32), C, axis=1, dtype=jnp.float32)
    logp_t = jnp.sum(logp * onehot, axis=1)                 # (N, H, W)
    loss = (-logp_t).reshape(-1)
    p_t = jnp.exp(logp_t).reshape(-1)
    k = min(int(max(0.1, min_kept) * N), p_t.size - 1)
    min_value = jnp.sort(p_t)[k]
    threshold = jnp.maximum(min_value, jnp.float32(thresh))
    mask = (p_t < threshold).astype(jnp.float32)
    return jnp.sum(loss * mask) / jnp.sum(mask)


if __name__ == "__main__":
    key = jax.random.PRNGKey(0)
    ohem = OhemCrossEntropyPallas(thres=0.7, min_kept=0.7)

    # Test 1: aligned spatial size.
    k1, k2 = jax.random.split(key)
    N, C, H, W = 2, 4, 16, 16
    score = jax.random.normal(k1, (N, C, H, W), dtype=jnp.float32)
    target = jax.random.randint(k2, (N, H, W), 0, C, dtype=jnp.int32)
    out = jax.block_until_ready(ohem(score, target))
    ref = jax.block_until_ready(ohem_reference(score, target))
    assert jnp.allclose(out, ref, rtol=1e-4, atol=1e-5), (out, ref)

    # Test 2: non-multiple-of-128 spatial size (exercises the ragged-tail masking path).
    k3, k4 = jax.random.split(k1)
    H2, W2 = 10, 10
    score2 = jax.random.normal(k3, (N, C, H2, W2), dtype=jnp.float32)
    target2 = jax.random.randint(k4, (N, H2, W2), 0, C, dtype=jnp.int32)
    out2 = jax.block_until_ready(ohem(score2, target2))
    ref2 = jax.block_until_ready(ohem_reference(score2, target2))
    assert jnp.allclose(out2, ref2, rtol=1e-4, atol=1e-5), (out2, ref2)

    print("KERNEL_OK")
</pallas_src>

<mosaic_0001>
module attributes {stable_mosaic.version = 11 : i64} {
  func.func @kernel(%arg0: i32, %arg1: i32, %arg2: memref<1x4x1024xf32, #tpu.memory_space<vmem>>, %arg3: memref<1x1x1024xi32, #tpu.memory_space<vmem>>, %arg4: memref<1x1x1024xf32, #tpu.memory_space<vmem>>) attributes {dimension_semantics = [#tpu.dimension_semantics<parallel>, #tpu.dimension_semantics<parallel>], iteration_bounds = array<i64: 2, 1>, scalar_prefetch = 0 : i64, scratch_operands = 0 : i64, tpu.core_type = #tpu.core_type<tc>, window_params = [{transform_indices = @transform_0, window_bounds = array<i64: 1, 4, 1024>}, {transform_indices = @transform_1, window_bounds = array<i64: 1, 1, 1024>}, {transform_indices = @transform_2, window_bounds = array<i64: 1, 1, 1024>}]} {
    %c0 = arith.constant 0 : index
    %c0_0 = arith.constant 0 : index
    %c0_1 = arith.constant 0 : index
    %0 = vector.load %arg2[%c0, %c0_0, %c0_1] : memref<1x4x1024xf32, #tpu.memory_space<vmem>>, vector<1x4x1024xf32>
    %1 = vector.shape_cast %0 : vector<1x4x1024xf32> to vector<4x1024xf32>
    %c0_2 = arith.constant 0 : index
    %c0_3 = arith.constant 0 : index
    %c0_4 = arith.constant 0 : index
    %2 = vector.load %arg3[%c0_2, %c0_3, %c0_4] : memref<1x1x1024xi32, #tpu.memory_space<vmem>>, vector<1x1x1024xi32>
    %3 = vector.shape_cast %2 : vector<1x1x1024xi32> to vector<1x1024xi32>
    %cst = arith.constant dense<0xFF800000> : vector<1024xf32>
    %4 = vector.multi_reduction <maximumf>, %1, %cst [0] : vector<4x1024xf32> to vector<1024xf32>
    %5 = vector.shape_cast %4 : vector<1024xf32> to vector<1x1024xf32>
    %6 = vector.broadcast %5 : vector<1x1024xf32> to vector<4x1024xf32>
    %7 = arith.subf %1, %6 : vector<4x1024xf32>
    %8 = math.exp %7 : vector<4x1024xf32>
    %cst_5 = arith.constant dense<0.000000e+00> : vector<1024xf32>
    %9 = vector.multi_reduction <add>, %8, %cst_5 [0] : vector<4x1024xf32> to vector<1024xf32>
    %10 = vector.shape_cast %9 : vector<1024xf32> to vector<1x1024xf32>
    %11 = math.log %10 : vector<1x1024xf32>
    %12 = tpu.iota {dimensions = array<i32: 0>} : vector<4x1024xi32>
    %13 = vector.broadcast %3 : vector<1x1024xi32> to vector<4x1024xi32>
    %14 = arith.cmpi eq, %12, %13 : vector<4x1024xi32>
    %cst_6 = arith.constant 0.000000e+00 : f32
    %15 = vector.broadcast %cst_6 : f32 to vector<4x1024xf32>
    %16 = arith.select %14, %7, %15 : vector<4x1024xi1>, vector<4x1024xf32>
    %cst_7 = arith.constant dense<0.000000e+00> : vector<1024xf32>
    %17 = vector.multi_reduction <add>, %16, %cst_7 [0] : vector<4x1024xf32> to vector<1024xf32>
    %18 = vector.shape_cast %17 : vector<1024xf32> to vector<1x1024xf32>
    %19 = arith.subf %11, %18 : vector<1x1024xf32>
    %20 = tpu.iota {dimensions = array<i32: 1>} : vector<1x1024xi32>
    %c1024_i32 = arith.constant 1024 : i32
    %21 = arith.muli %arg1, %c1024_i32 : i32
    %22 = vector.broadcast %21 : i32 to vector<1x1024xi32>
    %23 = arith.addi %22, %20 : vector<1x1024xi32>
    %c256_i32 = arith.constant 256 : i32
    %24 = vector.broadcast %c256_i32 : i32 to vector<1x1024xi32>
    %25 = arith.cmpi slt, %23, %24 : vector<1x1024xi32>
    %cst_8 = arith.constant -1.000000e+00 : f32
    %26 = vector.broadcast %cst_8 : f32 to vector<1x1024xf32>
    %27 = arith.select %25, %19, %26 : vector<1x1024xi1>, vector<1x1024xf32>
    %c0_9 = arith.constant 0 : index
    %c0_10 = arith.constant 0 : index
    %c0_11 = arith.constant 0 : index
    %28 = vector.load %arg4[%c0_9, %c0_10, %c0_11] : memref<1x1x1024xf32, #tpu.memory_space<vmem>>, vector<1x1x1024xf32>
    %29 = vector.shape_cast %28 : vector<1x1x1024xf32> to vector<1x1024xf32>
    %30 = vector.shape_cast %27 : vector<1x1024xf32> to vector<1x1x1024xf32>
    tpu.vector_store %arg4[%c0_9, %c0_10, %c0_11], %30 {strides = array<i32>} : memref<1x1x1024xf32, #tpu.memory_space<vmem>>, vector<1x1x1024xf32>,
    return
  }
  func.func @transform_0(%arg0: i32, %arg1: i32) -> (i32, i32, i32) {
    %c0_i32 = arith.constant 0 : i32
    %c0_i32_0 = arith.constant 0 : i32
    return %arg0, %c0_i32, %arg1 : i32, i32, i32
  }
  func.func @transform_1(%arg0: i32, %arg1: i32) -> (i32, i32, i32) {
    %c0_i32 = arith.constant 0 : i32
    %c0_i32_0 = arith.constant 0 : i32
    return %arg0, %c0_i32, %arg1 : i32, i32, i32
  }
  func.func @transform_2(%arg0: i32, %arg1: i32) -> (i32, i32, i32) {
    %c0_i32 = arith.constant 0 : i32
    %c0_i32_0 = arith.constant 0 : i32
    return %arg0, %c0_i32, %arg1 : i32, i32, i32
  }
}

</mosaic_0001>

<llo_original>
// kernel: tpu_custom_call.1
$region0: #{tpu_custom_call.1}
  #allocation0 [shape = 'u32[]', space=smem, size = 0x4, offset = 0x4, fixed_abs, tag = 'smem constant byte address 0x4 - core index']
  #allocation1 [shape = 'u32[72,128]{1,0:T(1,128)}', space=vmem, size = 0x9000, scoped, tag = 'internal scratch']
  %s0 = inlined_call_operand.hbm [shape: f32[2,4,256], index: 0, kind: input, shape index: {}]
  %s1 = inlined_call_operand.hbm [shape: s32[2,1,256], index: 1, kind: input, shape index: {}]
  %s2 = inlined_call_operand.hbm [shape: f32[2,1,1024], index: 2, kind: output, shape index: {}]
  %s3 = sld [smem:[#allocation0]]
  $region49: #{tpu_custom_call.1} parent=0
    _
  %s5 = ssub.s32 1, %s3
  %s6 = scalar_select 0, %s5, %s3
  $region1: #{tpu_custom_call.1} parent=0
    #allocation2 [shape = 'u8[32768]{0}', space=vmem, size = 0x8000, scoped, tag = 'input window, operand 0']
    #allocation3 [shape = 's32[2]{0}', space=sflag, size = 0x8, scoped, tag = 'scoped memory for tpu_custom_call.1']
    #allocation4 [shape = 's32[2]{0}', space=sflag, size = 0x8, scoped, tag = 'scoped memory for tpu_custom_call.1']
    #allocation5 [shape = 'u8[8192]{0}', space=vmem, size = 0x2000, scoped, tag = 'input window, operand 1']
    #allocation6 [shape = 's32[2]{0}', space=sflag, size = 0x8, scoped, tag = 'scoped memory for tpu_custom_call.1']
    #allocation7 [shape = 'u8[8192]{0}', space=vmem, size = 0x2000, scoped, tag = 'output window, operand 0']
    %7 = vsyncpa [#allocation3], 0
    %s8 = scalar_lea.sflag [#allocation3], 1
    %9 = vsyncpa %s8, 0
    %10 = vsyncpa [#allocation6], 0
    %s11 = scalar_lea.sflag [#allocation6], 1
    %12 = vsyncpa %s11, 0
    %13 = vsyncpa [#allocation4], 0
    %s14 = scalar_lea.sflag [#allocation4], 1
    %15 = vsyncpa %s14, 0
    loop: start=0, step=1, limit=4
    $region2: #{tpu_custom_call.1} parent=1 // loop_pre_header
      _
    $region3: #{tpu_custom_call.1} parent=1 // loop_header
      %s17 = sphi 0, %s21
      %p18 = scmp.ge.s32.totalorder %s17, 4
      %s24 = sphi 0, %s36
      %s25 = sphi 0, %s32
      %s26 = sphi 0, %s24
      %s27 = sphi 0, %s25
      %s28 = sphi 0, %s26
      %s29 = sphi 0, %s27
      %s41 = sphi 0, %s43
      %s44 = sphi 0, %s41
      %s45 = sphi 0, %s44
      %s61 = sphi 0, %s45
      %s69 = sphi 0, %s71
      %s72 = sphi 0, %s69
      %s73 = sphi 0, %s72
      %s89 = sphi 0, %s73
      %s97 = sphi 0, %s99
      %s100 = sphi 0, %s97
      %s101 = sphi 0, %s100
      %s117 = sphi 0, %s101
    $region4: #{tpu_custom_call.1} parent=1 // loop_header_branch
      %20 = sbr.rel (%p18) target = $region8
    $region5: #{tpu_custom_call.1} parent=1 // loop_body
      %s22 = ssub.s32 %s17, 1
      %s23 = ssub.s32 %s17, 2
      %s30 = sadd.s32 1, %s25
      %p31 = scmp.ge.s32.totalorder %s30, 1
      %s32 = scalar_select %p31, 0, %s30
      %s33 = sadd.s32 1, %s24
      %s34 = scalar_select %p31, %s33, %s24
      %p35 = scmp.ge.s32.totalorder %s34, 2
      %s36 = scalar_select %p35, 0, %s34
      %s37 = ssub.s32 %s24, %s36
      %s38 = ssub.s32 %s25, %s32
      %s39 = sor.u32 %s37, %s38
      %p40 = scmp.eq.s32.totalorder %s39, 0
      %s42 = sadd.s32 %s41, 1
      %s43 = scalar_select %p40, %s41, %s42
      %p46 = pneg %p40
      %p47 = scmp.eq.s32.totalorder %s17, 1
      %p48 = por %p46, %p47
      %p49 = scmp.ne.s32.totalorder %s41, %s44
      %p50 = scmp.eq.s32.totalorder %s17, 0
      %p51 = por %p49, %p50
      %p52 = scmp.ne.s32.totalorder %s41, %s44
      %p53 = scmp.eq.s32.totalorder %s22, 1
      %p54 = por %p52, %p53
      %p55 = scmp.ne.s32.totalorder %s44, %s45
      %p56 = scmp.eq.s32.totalorder %s22, 0
      %p57 = por %p55, %p56
      %p58 = scmp.ne.s32.totalorder %s44, %s45
      %p59 = scmp.eq.s32.totalorder %s23, 1
      %p60 = por %p58, %p59
      %p62 = scmp.ne.s32.totalorder %s45, %s61
      %p63 = scmp.eq.s32.totalorder %s23, 0
      %p64 = por %p62, %p63
      %s65 = ssub.s32 %s24, %s36
      %s66 = ssub.s32 %s25, %s32
      %s67 = sor.u32 %s65, %s66
      %p68 = scmp.eq.s32.totalorder %s67, 0
      %s70 = sadd.s32 %s69, 1
      %s71 = scalar_select %p68, %s69, %s70
      %p74 = pneg %p68
      %p75 = scmp.eq.s32.totalorder %s17, 1
      %p76 = por %p74, %p75
      %p77 = scmp.ne.s32.totalorder %s69, %s72
      %p78 = scmp.eq.s32.totalorder %s17, 0
      %p79 = por %p77, %p78
      %p80 = scmp.ne.s32.totalorder %s69, %s72
      %p81 = scmp.eq.s32.totalorder %s22, 1
      %p82 = por %p80, %p81
      %p83 = scmp.ne.s32.totalorder %s72, %s73
      %p84 = scmp.eq.s32.totalorder %s22, 0
      %p85 = por %p83, %p84
      %p86 = scmp.ne.s32.totalorder %s72, %s73
      %p87 = scmp.eq.s32.totalorder %s23, 1
      %p88 = por %p86, %p87
      %p90 = scmp.ne.s32.totalorder %s73, %s89
      %p91 = scmp.eq.s32.totalorder %s23, 0
      %p92 = por %p90, %p91
      %s93 = ssub.s32 %s24, %s36
      %s94 = ssub.s32 %s25, %s32
      %s95 = sor.u32 %s93, %s94
      %p96 = scmp.eq.s32.totalorder %s95, 0
      %s98 = sadd.s32 %s97, 1
      %s99 = scalar_select %p96, %s97, %s98
      %p102 = pneg %p96
      %p103 = scmp.eq.s32.totalorder %s17, 1
      %p104 = por %p102, %p103
      %p105 = scmp.ne.s32.totalorder %s97, %s100
      %p106 = scmp.eq.s32.totalorder %s17, 0
      %p107 = por %p105, %p106
      %p108 = scmp.ne.s32.totalorder %s97, %s100
      %p109 = scmp.eq.s32.totalorder %s22, 1
      %p110 = por %p108, %p109
      %p111 = scmp.ne.s32.totalorder %s100, %s101
      %p112 = scmp.eq.s32.totalorder %s22, 0
      %p113 = por %p111, %p112
      %p114 = scmp.ne.s32.totalorder %s100, %s101
      %p115 = scmp.eq.s32.totalorder %s23, 1
      %p116 = por %p114, %p115
      %p118 = scmp.ne.s32.totalorder %s101, %s117
      %p119 = scmp.eq.s32.totalorder %s23, 0
      %p120 = por %p118, %p119
      %p121 = scmp.le.s32.totalorder 1, %s17
      %p122 = scmp.lt.s32.totalorder %s17, 3
      %p123 = pnand %p121, %p122
      %p124 = pneg %p123
      // Predicated region
      $region9: #{tpu_custom_call.1} parent=5 // pred_check
        _
      $region10: #{tpu_custom_call.1} parent=5 // pred_check_branch
        %126 = sbr.rel (%p123) target = $region12
      $region11: #{tpu_custom_call.1} parent=5 // pred_region
        %s127 = ssub.s32 %s17, 1
      $region12: #{tpu_custom_call.1} parent=5 // pred_fallthru
        _
      %p128 = scmp.lt.s32.totalorder %s17, 2
      // Predicated region
      $region13: #{tpu_custom_call.1} parent=5 // pred_check
        %p129 = pneg %p128
      $region14: #{tpu_custom_call.1} parent=5 // pred_check_branch
        %131 = sbr.rel (%p129) target = $region16
      $region15: #{tpu_custom_call.1} parent=5 // pred_region
        // Predicated region
        $region17: #{tpu_custom_call.1} parent=15 // pred_check
          %p132 = pneg %p51
        $region18: #{tpu_custom_call.1} parent=15 // pred_check_branch
          %134 = sbr.rel (%p132) target = $region20
        $region19: #{tpu_custom_call.1} parent=15 // pred_region
          %s135 = sand.u32 %s41, 1
          %s136 = scalar_lea.sflag [#allocation3], %s135
          %s137 = sand.u32 %s41, 1
          %s138 = smul.addr %s137, 32
          %s139 = scalar_lea.vmem [#allocation2], %s138
          %s140 = smul.u32 8, %s25
          %s141 = ssub.s32 2, %s140
          %s142 = smul.u32 4, %s141
          %s143 = ssub.s32 32, %s142
          %s144 = sshll.u32 %s143, 4
          %145 = vsyncadd %s136, %s144
          %p146 = scmp.ne.s32.totalorder 0, %s142
          %s147 = smul.addr %s24, 2
          %s148 = sadd.s32 %s140, %s147
          %s149 = smul.addr %s148, 4
          %s150 = scalar_lea.hbm %s0, %s149
          %s151 = smul.u32 %s141, 4
          %s152 = sshll.u32 %s151, 4
          %s153 = sshll.u32 %s150, 4
          %s154 = int_to_ptr.hbm [resolvable:$true] %s153
          %s155 = sshll.u32 %s139, 4
          %s156 = int_to_ptr.vmem [resolvable:$true] %s155
          %158 = dma.hbm_to_vmem [thread:$0]  (%p146), %s154, %s152, %s156, %s136
        $region20: #{tpu_custom_call.1} parent=15 // pred_fallthru
          _
        // Predicated region
        $region21: #{tpu_custom_call.1} parent=15 // pred_check
          %p159 = pneg %p79
        $region22: #{tpu_custom_call.1} parent=15 // pred_check_branch
          %161 = sbr.rel (%p159) target = $region24
        $region23: #{tpu_custom_call.1} parent=15 // pred_region
          %s162 = sand.u32 %s69, 1
          %s163 = scalar_lea.sflag [#allocation6], %s162
          %s164 = sand.u32 %s69, 1
          %s165 = smul.addr %s164, 8
          %s166 = scalar_lea.vmem [#allocation5], %s165
          %s167 = smul.u32 8, %s25
          %s168 = ssub.s32 2, %s167
          %s169 = ssub.s32 8, %s168
          %s170 = sshll.u32 %s169, 4
          %171 = vsyncadd %s163, %s170
          %p172 = scmp.ne.s32.totalorder 0, %s168
          %s173 = smul.addr %s24, 2
          %s174 = sadd.s32 %s167, %s173
          %s175 = scalar_lea.hbm %s1, %s174
          %s176 = sshll.u32 %s168, 4
          %s177 = sshll.u32 %s175, 4
          %s178 = int_to_ptr.hbm [resolvable:$true] %s177
          %s179 = sshll.u32 %s166, 4
          %s180 = int_to_ptr.vmem [resolvable:$true] %s179
          %182 = dma.hbm_to_vmem [thread:$0]  (%p172), %s178, %s176, %s180, %s163
        $region24: #{tpu_custom_call.1} parent=15 // pred_fallthru
          _
      $region16: #{tpu_custom_call.1} parent=5 // pred_fallthru
        _
      %p183 = scmp.le.s32.totalorder 1, %s17
      %p184 = scmp.lt.s32.totalorder %s17, 3
      %p185 = pnand %p183, %p184
      %p186 = pneg %p185
      // Predicated region
      $region25: #{tpu_custom_call.1} parent=5 // pred_check
        _
      $region26: #{tpu_custom_call.1} parent=5 // pred_check_branch
        %188 = sbr.rel (%p185) target = $region28
      $region27: #{tpu_custom_call.1} parent=5 // pred_region
        %s189 = ssub.s32 %s17, 1
        %s190 = sand.u32 %s44, 1
        %s191 = scalar_lea.sflag [#allocation3], %s190
        %s192 = sand.u32 %s44, 1
        %s193 = smul.addr %s192, 32
        %s194 = scalar_lea.vmem [#allocation2], %s193
        // Predicated region
        $region29: #{tpu_custom_call.1} parent=27 // pred_check
          %p195 = pneg %p57
        $region30: #{tpu_custom_call.1} parent=27 // pred_check_branch
          %197 = sbr.rel (%p195) target = $region32
        $region31: #{tpu_custom_call.1} parent=27 // pred_region
          %199 = dma.done %s191, 512
        $region32: #{tpu_custom_call.1} parent=27 // pred_fallthru
          _
        %s200 = sand.u32 %s72, 1
        %s201 = scalar_lea.sflag [#allocation6], %s200
        %s202 = sand.u32 %s72, 1
        %s203 = smul.addr %s202, 8
        %s204 = scalar_lea.vmem [#allocation5], %s203
        // Predicated region
        $region33: #{tpu_custom_call.1} parent=27 // pred_check
          %p205 = pneg %p85
        $region34: #{tpu_custom_call.1} parent=27 // pred_check_branch
          %207 = sbr.rel (%p205) target = $region36
        $region35: #{tpu_custom_call.1} parent=27 // pred_region
          %209 = dma.done %s201, 128
        $region36: #{tpu_custom_call.1} parent=27 // pred_fallthru
          _
        %s210 = sand.u32 %s44, 1
        %s211 = scalar_lea.sflag [#allocation3], %s210
        %s212 = sand.u32 %s44, 1
        %s213 = smul.addr %s212, 32
        %s214 = scalar_lea.vmem [#allocation2], %s213
        %p215 = pneg %p57
        %p216 = pneg %p54
        %s217 = sand.u32 %s72, 1
        %s218 = scalar_lea.sflag [#allocation6], %s217
        %s219 = sand.u32 %s72, 1
        %s220 = smul.addr %s219, 8
        %s221 = scalar_lea.vmem [#allocation5], %s220
        %p222 = pneg %p85
        %p223 = pneg %p82
        %p224 = pneg %p113
        %p225 = pneg %p110
        %s226 = sand.u32 %s100, 1
        %s227 = scalar_lea.sflag [#allocation4], %s226
        %s228 = sand.u32 %s100, 1
        %s229 = smul.addr %s228, 8
        %s230 = scalar_lea.vmem [#allocation7], %s229
        %s231 = smul.u32 8, %s27
        %s232 = ssub.s32 2, %s231
        %s233 = smul.u32 4, %s232
        %s234 = smul.u32 8, %s27
        %s235 = ssub.s32 2, %s234
        %s236 = smul.u32 8, %s27
        %v237 = vld [vmem:[%s194] sm:$0xff]
        %v238 = vld [vmem:[%s194 + $0x8] sm:$0xff]
        %v239 = vld [vmem:[%s194 + $0x10] sm:$0xff]
        %v240 = vld [vmem:[%s194 + $0x18] sm:$0xff]
        %v241 = vld [vmem:[%s204] sm:$0xff]
        %246 = vst [vmem:[#allocation1] ss:$2 sm:$0xff] %v237
        %s247 = scalar_lea.vmem [#allocation1], 16
        %248 = vst [vmem:[%s247] ss:$2 sm:$0xff] %v238
        %s249 = scalar_lea.vmem [#allocation1], 32
        %250 = vst [vmem:[%s249] ss:$2 sm:$0xff] %v239
        %s251 = scalar_lea.vmem [#allocation1], 48
        %252 = vst [vmem:[%s251] ss:$2 sm:$0xff] %v240
        %v253 = vld.sshfl [vmem:[#allocation1] sm:$0xff pattern:$0x75316420]
        %v254 = vld.sshfl [vmem:[#allocation1 + $0x8] sm:$0xff pattern:$0x75316420]
        %v255 = vld.sshfl [vmem:[#allocation1 + $0x10] sm:$0xff pattern:$0x75316420]
        %v256 = vld.sshfl [vmem:[#allocation1 + $0x18] sm:$0xff pattern:$0x75316420]
        %v257 = vld.sshfl [vmem:[#allocation1 + $0x20] sm:$0xff pattern:$0x75316420]
        %v258 = vld.sshfl [vmem:[#allocation1 + $0x28] sm:$0xff pattern:$0x75316420]
        %v259 = vld.sshfl [vmem:[#allocation1 + $0x30] sm:$0xff pattern:$0x75316420]
        %v260 = vld.sshfl [vmem:[#allocation1 + $0x38] sm:$0xff pattern:$0x75316420]
        %vm269 = vcmask 1043456
        %v270 = vsel %vm269, %v253, -inf
        %v271 = vrot.slane %v270, 4
        %v272 = vmax.f32 %v270, %v271
        %v273 = vrot.slane %v272, 2
        %v274 = vmax.f32 %v272, %v273
        %v275 = vrot.slane %v274, 1
        %v276 = vmax.f32 %v274, %v275
        %v277 = vsel %vm269, %v254, -inf
        %v278 = vrot.slane %v277, 4
        %v279 = vmax.f32 %v277, %v278
        %v280 = vrot.slane %v279, 2
        %v281 = vmax.f32 %v279, %v280
        %v282 = vrot.slane %v281, 1
        %v283 = vmax.f32 %v281, %v282
        %v284 = vsel %vm269, %v255, -inf
        %v285 = vrot.slane %v284, 4
        %v286 = vmax.f32 %v284, %v285
        %v287 = vrot.slane %v286, 2
        %v288 = vmax.f32 %v286, %v287
        %v289 = vrot.slane %v288, 1
        %v290 = vmax.f32 %v288, %v289
        %v291 = vsel %vm269, %v256, -inf
        %v292 = vrot.slane %v291, 4
        %v293 = vmax.f32 %v291, %v292
        %v294 = vrot.slane %v293, 2
        %v295 = vmax.f32 %v293, %v294
        %v296 = vrot.slane %v295, 1
        %v297 = vmax.f32 %v295, %v296
        %v298 = vsel %vm269, %v257, -inf
        %v299 = vrot.slane %v298, 4
        %v300 = vmax.f32 %v298, %v299
        %v301 = vrot.slane %v300, 2
        %v302 = vmax.f32 %v300, %v301
        %v303 = vrot.slane %v302, 1
        %v304 = vmax.f32 %v302, %v303
        %v305 = vsel %vm269, %v258, -inf
        %v306 = vrot.slane %v305, 4
        %v307 = vmax.f32 %v305, %v306
        %v308 = vrot.slane %v307, 2
        %v309 = vmax.f32 %v307, %v308
        %v310 = vrot.slane %v309, 1
        %v311 = vmax.f32 %v309, %v310
        %v312 = vsel %vm269, %v259, -inf
        %v313 = vrot.slane %v312, 4
        %v314 = vmax.f32 %v312, %v313
        %v315 = vrot.slane %v314, 2
        %v316 = vmax.f32 %v314, %v315
        %v317 = vrot.slane %v316, 1
        %v318 = vmax.f32 %v316, %v317
        %v319 = vsel %vm269, %v260, -inf
        %v320 = vrot.slane %v319, 4
        %v321 = vmax.f32 %v319, %v320
        %v322 = vrot.slane %v321, 2
        %v323 = vmax.f32 %v321, %v322
        %v324 = vrot.slane %v323, 1
        %v325 = vmax.f32 %v323, %v324
        %v334 = vrot.slane %v283, 4
        %v335 = vrot.slane %v297, 4
        %v336 = vrot.slane %v311, 4
        %v337 = vrot.slane %v325, 4
        %v338 = vsel %vm269, %v276, %v334
        %v339 = vsel %vm269, %v290, %v335
        %v340 = vsel %vm269, %v304, %v336
        %v341 = vsel %vm269, %v318, %v337
        %v346 = vsub.f32 %v237, %v338
        %v347 = vsub.f32 %v238, %v339
        %v348 = vsub.f32 %v239, %v340
        %v349 = vsub.f32 %v240, %v341
        %v350 = vmul.f32 %v346, 1.442695
        %v351 = vpow.pop %v350
        %v352 = vmul.f32 %v347, 1.442695
        %v353 = vpow.pop %v352
        %v354 = vmul.f32 %v348, 1.442695
        %v355 = vpow.pop %v354
        %v356 = vmul.f32 %v349, 1.442695
        %v357 = vpow.pop %v356
        %362 = vst [vmem:[#allocation1] ss:$2 sm:$0xff] %v351
        %s363 = scalar_lea.vmem [#allocation1], 16
        %364 = vst [vmem:[%s363] ss:$2 sm:$0xff] %v353
        %s365 = scalar_lea.vmem [#allocation1], 32
        %366 = vst [vmem:[%s365] ss:$2 sm:$0xff] %v355
        %s367 = scalar_lea.vmem [#allocation1], 48
        %368 = vst [vmem:[%s367] ss:$2 sm:$0xff] %v357
        %v369 = vld.sshfl [vmem:[#allocation1] sm:$0xff pattern:$0x75316420]
        %v370 = vld.sshfl [vmem:[#allocation1 + $0x8] sm:$0xff pattern:$0x75316420]
        %v371 = vld.sshfl [vmem:[#allocation1 + $0x10] sm:$0xff pattern:$0x75316420]
        %v372 = vld.sshfl [vmem:[#allocation1 + $0x18] sm:$0xff pattern:$0x75316420]
        %v373 = vld.sshfl [vmem:[#allocation1 + $0x20] sm:$0xff pattern:$0x75316420]
        %v374 = vld.sshfl [vmem:[#allocation1 + $0x28] sm:$0xff pattern:$0x75316420]
        %v375 = vld.sshfl [vmem:[#allocation1 + $0x30] sm:$0xff pattern:$0x75316420]
        %v376 = vld.sshfl [vmem:[#allocation1 + $0x38] sm:$0xff pattern:$0x75316420]
        %v385 = vsel %vm269, %v369, 0.0
        %v386 = vrot.slane %v385, 4
        %v387 = vadd.f32 %v385, %v386
        %v388 = vrot.slane %v387, 2
        %v389 = vadd.f32 %v387, %v388
        %v390 = vrot.slane %v389, 1
        %v391 = vadd.f32 %v389, %v390
        %v392 = vsel %vm269, %v370, 0.0
        %v393 = vrot.slane %v392, 4
        %v394 = vadd.f32 %v392, %v393
        %v395 = vrot.slane %v394, 2
        %v396 = vadd.f32 %v394, %v395
        %v397 = vrot.slane %v396, 1
        %v398 = vadd.f32 %v396, %v397
        %v399 = vsel %vm269, %v371, 0.0
        %v400 = vrot.slane %v399, 4
        %v401 = vadd.f32 %v399, %v400
        %v402 = vrot.slane %v401, 2
        %v403 = vadd.f32 %v401, %v402
        %v404 = vrot.slane %v403, 1
        %v405 = vadd.f32 %v403, %v404
        %v406 = vsel %vm269, %v372, 0.0
        %v407 = vrot.slane %v406, 4
        %v408 = vadd.f32 %v406, %v407
        %v409 = vrot.slane %v408, 2
        %v410 = vadd.f32 %v408, %v409
        %v411 = vrot.slane %v410, 1
        %v412 = vadd.f32 %v410, %v411
        %v413 = vsel %vm269, %v373, 0.0
        %v414 = vrot.slane %v413, 4
        %v415 = vadd.f32 %v413, %v414
        %v416 = vrot.slane %v415, 2
        %v417 = vadd.f32 %v415, %v416
        %v418 = vrot.slane %v417, 1
        %v419 = vadd.f32 %v417, %v418
        %v420 = vsel %vm269, %v374, 0.0
        %v421 = vrot.slane %v420, 4
        %v422 = vadd.f32 %v420, %v421
        %v423 = vrot.slane %v422, 2
        %v424 = vadd.f32 %v422, %v423
        %v425 = vrot.slane %v424, 1
        %v426 = vadd.f32 %v424, %v425
        %v427 = vsel %vm269, %v375, 0.0
        %v428 = vrot.slane %v427, 4
        %v429 = vadd.f32 %v427, %v428
        %v430 = vrot.slane %v429, 2
        %v431 = vadd.f32 %v429, %v430
        %v432 = vrot.slane %v431, 1
        %v433 = vadd.f32 %v431, %v432
        %v434 = vsel %vm269, %v376, 0.0
        %v435 = vrot.slane %v434, 4
        %v436 = vadd.f32 %v434, %v435
        %v437 = vrot.slane %v436, 2
        %v438 = vadd.f32 %v436, %v437
        %v439 = vrot.slane %v438, 1
        %v440 = vadd.f32 %v438, %v439
        %v441 = vlog2.pop %v391
        %v442 = vmul.f32 %v441, 0.6931472
        %v443 = vlog2.pop %v398
        %v444 = vmul.f32 %v443, 0.6931472
        %v445 = vlog2.pop %v405
        %v446 = vmul.f32 %v445, 0.6931472
        %v447 = vlog2.pop %v412
        %v448 = vmul.f32 %v447, 0.6931472
        %v449 = vlog2.pop %v419
        %v450 = vmul.f32 %v449, 0.6931472
        %v451 = vlog2.pop %v426
        %v452 = vmul.f32 %v451, 0.6931472
        %v453 = vlog2.pop %v433
        %v454 = vmul.f32 %v453, 0.6931472
        %v455 = vlog2.pop %v440
        %v456 = vmul.f32 %v455, 0.6931472
        %v457 = vlaneseq
        %v458 = vshrl.u32 %v457, 7
        %v459 = vperm.slane %v241, 0
        %v460 = vperm.slane %v241, 1
        %v461 = vperm.slane %v241, 2
        %v462 = vperm.slane %v241, 3
        %v463 = vperm.slane %v241, 4
        %v464 = vperm.slane %v241, 5
        %v465 = vperm.slane %v241, 6
        %v466 = vperm.slane %v241, 7
        %vm467 = vcmp.eq.s32.totalorder %v458, %v459
        %vm468 = vcmp.eq.s32.totalorder %v458, %v460
        %vm469 = vcmp.eq.s32.totalorder %v458, %v461
        %vm470 = vcmp.eq.s32.totalorder %v458, %v462
        %vm471 = vcmp.eq.s32.totalorder %v458, %v463
        %vm472 = vcmp.eq.s32.totalorder %v458, %v464
        %vm473 = vcmp.eq.s32.totalorder %v458, %v465
        %vm474 = vcmp.eq.s32.totalorder %v458, %v466
        %479 = vst [vmem:[#allocation1] ss:$2 sm:$0xff] %v346
        %s480 = scalar_lea.vmem [#allocation1], 16
        %481 = vst [vmem:[%s480] ss:$2 sm:$0xff] %v347
        %s482 = scalar_lea.vmem [#allocation1], 32
        %483 = vst [vmem:[%s482] ss:$2 sm:$0xff] %v348
        %s484 = scalar_lea.vmem [#allocation1], 48
        %485 = vst [vmem:[%s484] ss:$2 sm:$0xff] %v349
        %v486 = vld.sshfl [vmem:[#allocation1] sm:$0xff pattern:$0x75316420]
        %v487 = vld.sshfl [vmem:[#allocation1 + $0x8] sm:$0xff pattern:$0x75316420]
        %v488 = vld.sshfl [vmem:[#allocation1 + $0x10] sm:$0xff pattern:$0x75316420]
        %v489 = vld.sshfl [vmem:[#allocation1 + $0x18] sm:$0xff pattern:$0x75316420]
        %v490 = vld.sshfl [vmem:[#allocation1 + $0x20] sm:$0xff pattern:$0x75316420]
        %v491 = vld.sshfl [vmem:[#allocation1 + $0x28] sm:$0xff pattern:$0x75316420]
        %v492 = vld.sshfl [vmem:[#allocation1 + $0x30] sm:$0xff pattern:$0x75316420]
        %v493 = vld.sshfl [vmem:[#allocation1 + $0x38] sm:$0xff pattern:$0x75316420]
        %v502 = vsel %vm467, %v486, 0.0
        %v503 = vsel %vm468, %v487, 0.0
        %v504 = vsel %vm469, %v488, 0.0
        %v505 = vsel %vm470, %v489, 0.0
        %v506 = vsel %vm471, %v490, 0.0
        %v507 = vsel %vm472, %v491, 0.0
        %v508 = vsel %vm473, %v492, 0.0
        %v509 = vsel %vm474, %v493, 0.0
        %v510 = vsel %vm269, %v502, 0.0
        %v511 = vrot.slane %v510, 4
        %v512 = vadd.f32 %v510, %v511
        %v513 = vrot.slane %v512, 2
        %v514 = vadd.f32 %v512, %v513
        %v515 = vrot.slane %v514, 1
        %v516 = vadd.f32 %v514, %v515
        %v517 = vsel %vm269, %v503, 0.0
        %v518 = vrot.slane %v517, 4
        %v519 = vadd.f32 %v517, %v518
        %v520 = vrot.slane %v519, 2
        %v521 = vadd.f32 %v519, %v520
        %v522 = vrot.slane %v521, 1
        %v523 = vadd.f32 %v521, %v522
        %v524 = vsel %vm269, %v504, 0.0
        %v525 = vrot.slane %v524, 4
        %v526 = vadd.f32 %v524, %v525
        %v527 = vrot.slane %v526, 2
        %v528 = vadd.f32 %v526, %v527
        %v529 = vrot.slane %v528, 1
        %v530 = vadd.f32 %v528, %v529
        %v531 = vsel %vm269, %v505, 0.0
        %v532 = vrot.slane %v531, 4
        %v533 = vadd.f32 %v531, %v532
        %v534 = vrot.slane %v533, 2
        %v535 = vadd.f32 %v533, %v534
        %v536 = vrot.slane %v535, 1
        %v537 = vadd.f32 %v535, %v536
        %v538 = vsel %vm269, %v506, 0.0
        %v539 = vrot.slane %v538, 4
        %v540 = vadd.f32 %v538, %v539
        %v541 = vrot.slane %v540, 2
        %v542 = vadd.f32 %v540, %v541
        %v543 = vrot.slane %v542, 1
        %v544 = vadd.f32 %v542, %v543
        %v545 = vsel %vm269, %v507, 0.0
        %v546 = vrot.slane %v545, 4
        %v547 = vadd.f32 %v545, %v546
        %v548 = vrot.slane %v547, 2
        %v549 = vadd.f32 %v547, %v548
        %v550 = vrot.slane %v549, 1
        %v551 = vadd.f32 %v549, %v550
        %v552 = vsel %vm269, %v508, 0.0
        %v553 = vrot.slane %v552, 4
        %v554 = vadd.f32 %v552, %v553
        %v555 = vrot.slane %v554, 2
        %v556 = vadd.f32 %v554, %v555
        %v557 = vrot.slane %v556, 1
        %v558 = vadd.f32 %v556, %v557
        %v559 = vsel %vm269, %v509, 0.0
        %v560 = vrot.slane %v559, 4
        %v561 = vadd.f32 %v559, %v560
        %v562 = vrot.slane %v561, 2
        %v563 = vadd.f32 %v561, %v562
        %v564 = vrot.slane %v563, 1
        %v565 = vadd.f32 %v563, %v564
        %v566 = vsub.f32 %v442, %v516
        %v567 = vsub.f32 %v444, %v523
        %v568 = vsub.f32 %v446, %v530
        %v569 = vsub.f32 %v448, %v537
        %v570 = vsub.f32 %v450, %v544
        %v571 = vsub.f32 %v452, %v551
        %v572 = vsub.f32 %v454, %v558
        %v573 = vsub.f32 %v456, %v565
        %v574 = vlaneseq
        %v575 = vand.u32 %v574, 127
        %v576 = vadd.s32 %v575, 128
        %v577 = vadd.s32 %v575, 256
        %v578 = vadd.s32 %v575, 384
        %v579 = vadd.s32 %v575, 512
        %v580 = vadd.s32 %v575, 640
        %v581 = vadd.s32 %v575, 768
        %v582 = vadd.s32 %v575, 896
        %s583 = smul.u32 %s27, 1024
        %v584 = vstv %s583
        %v585 = vadd.s32 %v584, %v575
        %v586 = vadd.s32 %v584, %v576
        %v587 = vadd.s32 %v584, %v577
        %v588 = vadd.s32 %v584, %v578
        %v589 = vadd.s32 %v584, %v579
        %v590 = vadd.s32 %v584, %v580
        %v591 = vadd.s32 %v584, %v581
        %v592 = vadd.s32 %v584, %v582
        %vm593 = vcmp.lt.s32.totalorder %v585, 256
        %vm594 = vcmp.lt.s32.totalorder %v586, 256
        %vm595 = vcmp.lt.s32.totalorder %v587, 256
        %vm596 = vcmp.lt.s32.totalorder %v588, 256
        %vm597 = vcmp.lt.s32.totalorder %v589, 256
        %vm598 = vcmp.lt.s32.totalorder %v590, 256
        %vm599 = vcmp.lt.s32.totalorder %v591, 256
        %vm600 = vcmp.lt.s32.totalorder %v592, 256
        %v601 = vsel %vm593, %v566, -1.0
        %v602 = vsel %vm594, %v567, -1.0
        %v603 = vsel %vm595, %v568, -1.0
        %v604 = vsel %vm596, %v569, -1.0
        %v605 = vsel %vm597, %v570, -1.0
        %v606 = vsel %vm598, %v571, -1.0
        %v607 = vsel %vm599, %v572, -1.0
        %v608 = vsel %vm600, %v573, -1.0
        %v617 = vrot.slane %v602, 7
        %v618 = vrot.slane %v603, 6
        %v619 = vrot.slane %v604, 5
        %v620 = vrot.slane %v605, 4
        %v621 = vrot.slane %v606, 3
        %v622 = vrot.slane %v607, 2
        %v623 = vrot.slane %v608, 1
        %vm624 = vcmask 1040384
        %v625 = vsel %vm624, %v601, %v617
        %vm626 = vcmask 1042434
        %v627 = vsel %vm626, %v618, %v619
        %vm628 = vcmask 1041408
        %v629 = vsel %vm628, %v625, %v627
        %vm630 = vcmask 1044484
        %v631 = vsel %vm630, %v620, %v621
        %vm632 = vcmask 1046534
        %v633 = vsel %vm632, %v622, %v623
        %vm634 = vcmask 1045508
        %v635 = vsel %vm634, %v631, %v633
        %v636 = vsel %vm269, %v629, %v635
        %638 = vst [vmem:[%s230] sm:$0xff] %v636
        %s639 = sand.u32 %s100, 1
        %s640 = scalar_lea.sflag [#allocation4], %s639
        %s641 = sand.u32 %s100, 1
        %s642 = smul.addr %s641, 8
        %s643 = scalar_lea.vmem [#allocation7], %s642
        // Predicated region
        $region37: #{tpu_custom_call.1} parent=27 // pred_check
          %p644 = pneg %p110
        $region38: #{tpu_custom_call.1} parent=27 // pred_check_branch
          %646 = sbr.rel (%p644) target = $region40
        $region39: #{tpu_custom_call.1} parent=27 // pred_region
          %s647 = smul.u32 8, %s27
          %649 = vsyncadd %s640, 0
          %s650 = smul.addr %s26, 8
          %s651 = sadd.s32 %s647, %s650
          %s652 = scalar_lea.hbm %s2, %s651
          %s654 = sshll.u32 %s643, 4
          %s655 = int_to_ptr.vmem [resolvable:$true] %s654
          %s656 = sshll.u32 %s652, 4
          %s657 = int_to_ptr.hbm [resolvable:$true] %s656
          %659 = dma.vmem_to_hbm [thread:$0]  %s655, 128, %s657, %s640
        $region40: #{tpu_custom_call.1} parent=27 // pred_fallthru
          _
      $region28: #{tpu_custom_call.1} parent=5 // pred_fallthru
        _
      %p660 = scmp.le.s32.totalorder 2, %s17
      // Predicated region
      $region41: #{tpu_custom_call.1} parent=5 // pred_check
        %p661 = pneg %p660
      $region42: #{tpu_custom_call.1} parent=5 // pred_check_branch
        %663 = sbr.rel (%p661) target = $region44
      $region43: #{tpu_custom_call.1} parent=5 // pred_region
        %s664 = ssub.s32 %s17, 2
        // Predicated region
        $region45: #{tpu_custom_call.1} parent=43 // pred_check
          %p665 = pneg %p116
        $region46: #{tpu_custom_call.1} parent=43 // pred_check_branch
          %667 = sbr.rel (%p665) target = $region48
        $region47: #{tpu_custom_call.1} parent=43 // pred_region
          %s668 = sand.u32 %s101, 1
          %s669 = scalar_lea.sflag [#allocation4], %s668
          %s670 = sand.u32 %s101, 1
          %s671 = smul.addr %s670, 8
          %s672 = scalar_lea.vmem [#allocation7], %s671
          %674 = dma.done %s669, 128
        $region48: #{tpu_custom_call.1} parent=43 // pred_fallthru
          _
      $region44: #{tpu_custom_call.1} parent=5 // pred_fallthru
        _
    $region6: #{tpu_custom_call.1} parent=1 // loop_footer
      %s21 = sadd.s32 1, %s17
    $region7: #{tpu_custom_call.1} parent=1 // loop_footer_branch
      %16 = sbr.rel target = $region3
    $region8: #{tpu_custom_call.1} parent=1 // loop_exit
      _
    %675 = vsyncpa [#allocation3], 1
    %s676 = scalar_lea.sflag [#allocation3], 1
    %677 = vsyncpa %s676, 1
    %678 = vsyncpa [#allocation6], 1
    %s679 = scalar_lea.sflag [#allocation6], 1
    %680 = vsyncpa %s679, 1
    %681 = vsyncpa [#allocation4], 1
    %s682 = scalar_lea.sflag [#allocation4], 1
    %683 = vsyncpa %s682, 1

</llo_original>
